<compile_context>
chip_gen: v6e
topology: v6e:2x2x1
jax: 0.10.0
libtpu: 0.0.40
codegen_flags: <defaults>
</compile_context>

<pallas_src>
import math
import jax
import jax.numpy as jnp
from jax.experimental import pallas as pl
from jax.experimental.pallas import tpu as pltpu


def _single_attention_kernel(x_ref, xlast_ref, wt_ref, wx_ref, bh_ref, wa_ref,
                             ba_ref, v_ref, a_ref):
    BB, T, D = x_ref.shape
    H = wt_ref.shape[1]

    x = x_ref[...]                                    # (BB, T, D)
    x32 = x.astype(jnp.float32)                       # f32 copy for the VPU path

    # q = input[:, -1, :] @ Wt  -> (BB, H)  (MXU), with bh folded in once.
    q = jnp.dot(xlast_ref[...], wt_ref[...],
                preferred_element_type=jnp.float32)   # (BB, H)
    qb = q + bh_ref[...]                              # (BB, H)

    # k = input @ Wx as a single (BB*T, D) @ (D, H) MXU matmul.
    k = jnp.dot(x.reshape(BB * T, D), wx_ref[...],
                preferred_element_type=jnp.float32).reshape(BB, T, H)

    # h = tanh(q + k + bh)
    h = jnp.tanh(qb[:, None, :] + k)                  # (BB, T, H)

    # e = <h, Wa> + ba -> (BB, T): VPU multiply + lane reduce (no N=1 matmul).
    e = jnp.sum(h * wa_ref[...], axis=-1) + ba_ref[0]     # (BB, T)

    # Exact softmax over the time dimension (lane axis, lane-dense).
    m = jnp.max(e, axis=-1, keepdims=True)            # (BB, 1)
    p = jnp.exp(e - m)                                 # (BB, T)
    denom = jnp.sum(p, axis=-1, keepdims=True)         # (BB, 1)
    a = p / denom                                      # exact divide (see header)

    # v = sum_t a[:, t] * x[:, t, :] -> (BB, D): broadcast-mul + sublane reduce.
    v = jnp.sum(a[:, :, None] * x32, axis=1)           # (BB, D)

    v_ref[...] = v.astype(v_ref.dtype)
    a_ref[...] = a.astype(a_ref.dtype)


def _choose_block_b(B, T, D, itemsize=4, x_block_budget=4 << 20):
    """Batch tile: fill ~x_block_budget bytes of x per grid step, multiple of 8."""
    per_row = T * D * itemsize
    bb = max(8, (x_block_budget // max(per_row, 1)) // 8 * 8)
    b_pad8 = ((B + 7) // 8) * 8
    if b_pad8 >= 16:
        # keep >= 2 grid steps when the batch allows (v7x has 2 TensorCores)
        bb = min(bb, max(8, (b_pad8 // 2) // 8 * 8))
    return min(bb, b_pad8)


def single_attention(x, Wt, Wx, bh, Wa, ba, *, block_b=None, mxu_dtype=None):
    """x: (B, T, D) float32. Returns (v: (B, D), a: (B, T)).

    mxu_dtype: set to jnp.bfloat16 on v6e/v7x (and optionally v5e) to halve the
    HBM bytes of the x stream and use the native bf16 MXU path; default f32
    keeps the result bit-close to the PyTorch module.
    """
    B, T, D = x.shape
    H = Wt.shape[1]

    in_dtype = jnp.float32 if mxu_dtype is None else mxu_dtype
    itemsize = jnp.dtype(in_dtype).itemsize

    BB = block_b if block_b is not None else _choose_block_b(B, T, D, itemsize)
    assert BB % 8 == 0, "batch tile should fill MXU/vreg sublanes"

    B_pad = ((B + BB - 1) // BB) * BB
    x_p = x if B_pad == B else jnp.pad(x, ((0, B_pad - B), (0, 0), (0, 0)))
    x_p = x_p.astype(in_dtype)
    x_last = x_p[:, -1, :]                             # (B_pad, D), sliced once in XLA

    Wt_c = Wt.astype(in_dtype)
    Wx_c = Wx.astype(in_dtype)
    bh2 = bh.reshape(1, H).astype(jnp.float32)
    wa2 = Wa.reshape(1, H).astype(jnp.float32)         # Wa as a row for the VPU reduce
    ba1 = ba.reshape(1).astype(jnp.float32)            # scalar -> SMEM

    # Explicit scoped-VMEM limit: double-buffered x / x_last / outputs +
    # resident weights + slack, raised to >= 32 MiB but capped at 48 MiB so it
    # leaves headroom on v7x's 64 MiB physical VMEM.
    x_block = BB * T * D * itemsize
    xlast_block = BB * D * itemsize
    out_block = BB * (D + T) * 4
    w_bytes = 2 * D * H * itemsize + 2 * H * 4
    vmem_needed = 2 * (x_block + xlast_block + out_block) + 2 * w_bytes + (1 << 20)
    vmem_limit = int(min(max(2 * vmem_needed, 32 << 20), 48 << 20))

    grid_spec = pltpu.PrefetchScalarGridSpec(
        num_scalar_prefetch=0,
        grid=(B_pad // BB,),
        in_specs=[
            pl.BlockSpec((BB, T, D), lambda b: (b, 0, 0)),      # x: BB rows/step
            pl.BlockSpec((BB, D), lambda b: (b, 0)),            # x[:, -1, :]
            pl.BlockSpec((D, H), lambda b: (0, 0)),             # Wt (resident)
            pl.BlockSpec((D, H), lambda b: (0, 0)),             # Wx (resident)
            pl.BlockSpec((1, H), lambda b: (0, 0)),             # bh
            pl.BlockSpec((1, H), lambda b: (0, 0)),             # Wa row
            pl.BlockSpec(memory_space=pltpu.MemorySpace.SMEM),  # ba scalar
        ],
        out_specs=[
            pl.BlockSpec((BB, D), lambda b: (b, 0)),            # v
            pl.BlockSpec((BB, T), lambda b: (b, 0)),            # a (lane-dense)
        ],
    )

    v, a = pl.pallas_call(
        _single_attention_kernel,
        out_shape=(
            jax.ShapeDtypeStruct((B_pad, D), jnp.float32),
            jax.ShapeDtypeStruct((B_pad, T), jnp.float32),
        ),
        grid_spec=grid_spec,
        compiler_params=pltpu.CompilerParams(
            dimension_semantics=("parallel",),
            vmem_limit_bytes=vmem_limit,
        ),
    )(x_p, x_last, Wt_c, Wx_c, bh2, wa2, ba1)

    return v[:B], a[:B]


def single_attention_ref(x, Wt, Wx, bh, Wa, ba):
    """Pure-JAX reference mirroring the PyTorch forward ('add', not time-aware)."""
    B, T, D = x.shape
    H = Wt.shape[1]
    q = jnp.matmul(x[:, -1, :], Wt).reshape(B, 1, H)
    k = jnp.matmul(x, Wx)
    h = jnp.tanh(q + k + bh)
    e = (jnp.matmul(h, Wa) + ba).reshape(B, T)
    a = jax.nn.softmax(e, axis=-1)
    v = jnp.matmul(a[:, None, :], x).squeeze(1)
    return v, a


def _kaiming_uniform(key, shape, a=math.sqrt(5)):
    # matches torch.nn.init.kaiming_uniform_ (fan_in = shape[0] for 2-D weights)
    fan_in = shape[0]
    gain = math.sqrt(2.0 / (1.0 + a * a))
    bound = gain * math.sqrt(3.0 / fan_in)
    return jax.random.uniform(key, shape, jnp.float32, -bound, bound)


if __name__ == "__main__":
    B, T, D, H = 2, 8, 16, 32

    key = jax.random.PRNGKey(0)
    kx, kwt, kwx, kwa = jax.random.split(key, 4)

    x = jax.random.normal(kx, (B, T, D), dtype=jnp.float32)
    Wt = _kaiming_uniform(kwt, (D, H))
    Wx = _kaiming_uniform(kwx, (D, H))
    Wa = _kaiming_uniform(kwa, (H, 1))
    bh = jnp.zeros((H,), jnp.float32)
    ba = jnp.zeros((1,), jnp.float32)
    # TODO(synk): Wd / Wtime_aware parameters exist in __init__ but are unused in
    # this (add, non-time-aware, no-demographics) forward path, so they are omitted.

    v, a = single_attention(x, Wt, Wx, bh, Wa, ba)
    jax.block_until_ready((v, a))

    v_ref, a_ref = single_attention_ref(x, Wt, Wx, bh, Wa, ba)
    # Exact softmax divide -> tolerance tightened back to 1e-4 (covers only the
    # Pallas-EUP vs XLA transcendental implementation deltas and MXU f32 paths).
    assert jnp.allclose(v, v_ref, atol=1e-4, rtol=1e-4), "v mismatch"
    assert jnp.allclose(a, a_ref, atol=1e-4, rtol=1e-4), "a mismatch"

    print("KERNEL_OK")
</pallas_src>

<mosaic_0001>
module attributes {stable_mosaic.version = 11 : i64} {
  func.func @_single_attention_kernel(%arg0: i32, %arg1: memref<8x8x16xf32, #tpu.memory_space<vmem>>, %arg2: memref<8x16xf32, #tpu.memory_space<vmem>>, %arg3: memref<16x32xf32, #tpu.memory_space<vmem>>, %arg4: memref<16x32xf32, #tpu.memory_space<vmem>>, %arg5: memref<1x32xf32, #tpu.memory_space<vmem>>, %arg6: memref<1x32xf32, #tpu.memory_space<vmem>>, %arg7: memref<1xf32, #tpu.memory_space<smem>>, %arg8: memref<8x16xf32, #tpu.memory_space<vmem>>, %arg9: memref<8x8xf32, #tpu.memory_space<vmem>>) attributes {dimension_semantics = [#tpu.dimension_semantics<parallel>], iteration_bounds = array<i64: 1>, scalar_prefetch = 0 : i64, scratch_operands = 0 : i64, tpu.core_type = #tpu.core_type<tc>, window_params = [{transform_indices = @transform_0, window_bounds = array<i64: 8, 8, 16>}, {transform_indices = @transform_1, window_bounds = array<i64: 8, 16>}, {pipeline_mode = #tpu.pipeline_mode<synchronous>, transform_indices = @transform_2, window_bounds = array<i64: 16, 32>}, {pipeline_mode = #tpu.pipeline_mode<synchronous>, transform_indices = @transform_3, window_bounds = array<i64: 16, 32>}, {pipeline_mode = #tpu.pipeline_mode<synchronous>, transform_indices = @transform_4, window_bounds = array<i64: 1, 32>}, {pipeline_mode = #tpu.pipeline_mode<synchronous>, transform_indices = @transform_5, window_bounds = array<i64: 1, 32>}, {transform_indices = @transform_6, window_bounds = array<i64: 1>}, {transform_indices = @transform_7, window_bounds = array<i64: 8, 16>}, {transform_indices = @transform_8, window_bounds = array<i64: 8, 8>}]} {
    %c0 = arith.constant 0 : index
    %c0_0 = arith.constant 0 : index
    %c0_1 = arith.constant 0 : index
    %0 = vector.load %arg1[%c0, %c0_0, %c0_1] : memref<8x8x16xf32, #tpu.memory_space<vmem>>, vector<8x8x16xf32>
    %c0_2 = arith.constant 0 : index
    %c0_3 = arith.constant 0 : index
    %1 = vector.load %arg2[%c0_2, %c0_3] : memref<8x16xf32, #tpu.memory_space<vmem>>, vector<8x16xf32>
    %c0_4 = arith.constant 0 : index
    %c0_5 = arith.constant 0 : index
    %2 = vector.load %arg3[%c0_4, %c0_5] : memref<16x32xf32, #tpu.memory_space<vmem>>, vector<16x32xf32>
    %cst = arith.constant dense<0.000000e+00> : vector<8x32xf32>
    %3 = tpu.matmul %1, %2, %cst {dimension_numbers = #tpu.dot_dimension_numbers<[1], [0], [0], [1], [0, 0, 1, 1], [], []>} : vector<8x16xf32>, vector<16x32xf32>, vector<8x32xf32> -> vector<8x32xf32>
    %c0_6 = arith.constant 0 : index
    %c0_7 = arith.constant 0 : index
    %4 = vector.load %arg5[%c0_6, %c0_7] : memref<1x32xf32, #tpu.memory_space<vmem>>, vector<1x32xf32>
    %5 = vector.broadcast %4 : vector<1x32xf32> to vector<8x32xf32>
    %6 = arith.addf %3, %5 : vector<8x32xf32>
    %7 = vector.shape_cast %0 : vector<8x8x16xf32> to vector<64x16xf32>
    %c0_8 = arith.constant 0 : index
    %c0_9 = arith.constant 0 : index
    %8 = vector.load %arg4[%c0_8, %c0_9] : memref<16x32xf32, #tpu.memory_space<vmem>>, vector<16x32xf32>
    %cst_10 = arith.constant dense<0.000000e+00> : vector<64x32xf32>
    %9 = tpu.matmul %7, %8, %cst_10 {dimension_numbers = #tpu.dot_dimension_numbers<[1], [0], [0], [1], [0, 0, 1, 1], [], []>} : vector<64x16xf32>, vector<16x32xf32>, vector<64x32xf32> -> vector<64x32xf32>
    %10 = vector.shape_cast %9 : vector<64x32xf32> to vector<8x8x32xf32>
    %11 = vector.shape_cast %6 : vector<8x32xf32> to vector<8x1x32xf32>
    %12 = vector.broadcast %11 : vector<8x1x32xf32> to vector<8x8x32xf32>
    %13 = arith.addf %12, %10 : vector<8x8x32xf32>
    %14 = math.tanh %13 : vector<8x8x32xf32>
    %c0_11 = arith.constant 0 : index
    %c0_12 = arith.constant 0 : index
    %15 = vector.load %arg6[%c0_11, %c0_12] : memref<1x32xf32, #tpu.memory_space<vmem>>, vector<1x32xf32>
    %16 = vector.shape_cast %15 : vector<1x32xf32> to vector<1x1x32xf32>
    %17 = vector.broadcast %16 : vector<1x1x32xf32> to vector<8x8x32xf32>
    %18 = arith.mulf %14, %17 : vector<8x8x32xf32>
    %cst_13 = arith.constant dense<0.000000e+00> : vector<8x8xf32>
    %19 = vector.multi_reduction <add>, %18, %cst_13 [2] : vector<8x8x32xf32> to vector<8x8xf32>
    %c0_14 = arith.constant 0 : index
    %20 = memref.load %arg7[%c0_14] : memref<1xf32, #tpu.memory_space<smem>>
    %21 = vector.broadcast %20 : f32 to vector<8x8xf32>
    %22 = arith.addf %19, %21 : vector<8x8xf32>
    %cst_15 = arith.constant dense<0xFF800000> : vector<8xf32>
    %23 = vector.multi_reduction <maximumf>, %22, %cst_15 [1] : vector<8x8xf32> to vector<8xf32>
    %24 = vector.shape_cast %23 : vector<8xf32> to vector<8x1xf32>
    %25 = vector.broadcast %24 : vector<8x1xf32> to vector<8x8xf32>
    %26 = arith.subf %22, %25 : vector<8x8xf32>
    %27 = math.exp %26 : vector<8x8xf32>
    %cst_16 = arith.constant dense<0.000000e+00> : vector<8xf32>
    %28 = vector.multi_reduction <add>, %27, %cst_16 [1] : vector<8x8xf32> to vector<8xf32>
    %29 = vector.shape_cast %28 : vector<8xf32> to vector<8x1xf32>
    %30 = vector.broadcast %29 : vector<8x1xf32> to vector<8x8xf32>
    %31 = arith.divf %27, %30 : vector<8x8xf32>
    %32 = vector.shape_cast %31 : vector<8x8xf32> to vector<8x8x1xf32>
    %33 = vector.broadcast %32 : vector<8x8x1xf32> to vector<8x8x16xf32>
    %34 = arith.mulf %33, %0 : vector<8x8x16xf32>
    %cst_17 = arith.constant dense<0.000000e+00> : vector<8x16xf32>
    %35 = vector.multi_reduction <add>, %34, %cst_17 [1] : vector<8x8x16xf32> to vector<8x16xf32>
    %c0_18 = arith.constant 0 : index
    %c0_19 = arith.constant 0 : index
    %36 = vector.load %arg8[%c0_18, %c0_19] : memref<8x16xf32, #tpu.memory_space<vmem>>, vector<8x16xf32>
    tpu.vector_store %arg8[%c0_18, %c0_19], %35 {strides = array<i32>} : memref<8x16xf32, #tpu.memory_space<vmem>>, vector<8x16xf32>,
    %c0_20 = arith.constant 0 : index
    %c0_21 = arith.constant 0 : index
    %37 = vector.load %arg9[%c0_20, %c0_21] : memref<8x8xf32, #tpu.memory_space<vmem>>, vector<8x8xf32>
    tpu.vector_store %arg9[%c0_20, %c0_21], %31 {strides = array<i32>} : memref<8x8xf32, #tpu.memory_space<vmem>>, vector<8x8xf32>,
    return
  }
  func.func @transform_0(%arg0: i32) -> (i32, i32, i32) {
    %c0_i32 = arith.constant 0 : i32
    %c0_i32_0 = arith.constant 0 : i32
    %c0_i32_1 = arith.constant 0 : i32
    return %arg0, %c0_i32, %c0_i32_0 : i32, i32, i32
  }
  func.func @transform_1(%arg0: i32) -> (i32, i32) {
    %c0_i32 = arith.constant 0 : i32
    %c0_i32_0 = arith.constant 0 : i32
    return %arg0, %c0_i32 : i32, i32
  }
  func.func @transform_2(%arg0: i32) -> (i32, i32) {
    %c0_i32 = arith.constant 0 : i32
    %c0_i32_0 = arith.constant 0 : i32
    %c0_i32_1 = arith.constant 0 : i32
    return %c0_i32, %c0_i32_0 : i32, i32
  }
  func.func @transform_3(%arg0: i32) -> (i32, i32) {
    %c0_i32 = arith.constant 0 : i32
    %c0_i32_0 = arith.constant 0 : i32
    %c0_i32_1 = arith.constant 0 : i32
    return %c0_i32, %c0_i32_0 : i32, i32
  }
  func.func @transform_4(%arg0: i32) -> (i32, i32) {
    %c0_i32 = arith.constant 0 : i32
    %c0_i32_0 = arith.constant 0 : i32
    %c0_i32_1 = arith.constant 0 : i32
    return %c0_i32, %c0_i32_0 : i32, i32
  }
  func.func @transform_5(%arg0: i32) -> (i32, i32) {
    %c0_i32 = arith.constant 0 : i32
    %c0_i32_0 = arith.constant 0 : i32
    %c0_i32_1 = arith.constant 0 : i32
    return %c0_i32, %c0_i32_0 : i32, i32
  }
  func.func @transform_6(%arg0: i32) -> i32 {
    %c0_i32 = arith.constant 0 : i32
    %c0_i32_0 = arith.constant 0 : i32
    return %c0_i32 : i32
  }
  func.func @transform_7(%arg0: i32) -> (i32, i32) {
    %c0_i32 = arith.constant 0 : i32
    %c0_i32_0 = arith.constant 0 : i32
    return %arg0, %c0_i32 : i32, i32
  }
  func.func @transform_8(%arg0: i32) -> (i32, i32) {
    %c0_i32 = arith.constant 0 : i32
    %c0_i32_0 = arith.constant 0 : i32
    return %arg0, %c0_i32 : i32, i32
  }
}

</mosaic_0001>

<llo_original>
// kernel: tpu_custom_call.1
$region0: #{tpu_custom_call.1}
  #allocation0 [shape = 'u32[]', space=smem, size = 0x4, offset = 0x4, fixed_abs, tag = 'smem constant byte address 0x4 - core index']
  #allocation1 [shape = 'u32[144,128]{1,0:T(1,128)}', space=vmem, size = 0x12000, scoped, tag = 'internal scratch']
  #allocation2 [shape = 'f32[1]{0:T(128)S(6)}', space=smem, size = 0x200, scoped, tag = 'scoped memory for tpu_custom_call.1']
  %s0 = inlined_call_operand.hbm [shape: f32[8,8,16], index: 0, kind: input, shape index: {}]
  %s1 = inlined_call_operand.hbm [shape: f32[8,16], index: 1, kind: input, shape index: {}]
  %s2 = inlined_call_operand.hbm [shape: f32[16,32], index: 2, kind: input, shape index: {}]
  %s3 = inlined_call_operand.hbm [shape: f32[16,32], index: 3, kind: input, shape index: {}]
  %s4 = inlined_call_operand.vmem [shape: f32[1,32], index: 4, kind: input, shape index: {}]
  %s5 = inlined_call_operand.vmem [shape: f32[1,32], index: 5, kind: input, shape index: {}]
  %s6 = inlined_call_operand.<no memory space> [shape: f32[1], index: 6, kind: input, shape index: {}]
  %s7 = inlined_call_operand.hbm [shape: f32[8,16], index: 7, kind: output, shape index: {0}]
  %s8 = inlined_call_operand.hbm [shape: f32[8,8], index: 8, kind: output, shape index: {1}]
  %9 = xla_tuple %s7, %s8
  %s10 = sld [smem:[#allocation0]]
  $region62: #{tpu_custom_call.1} parent=0
    _
  %s12 = ssub.s32 1, %s10
  %s13 = scalar_select 0, %s12, %s10
  %14 = sst [smem:[#allocation2]] %s6
  $region1: #{tpu_custom_call.1} parent=0
    #allocation3 [shape = 'u8[32768]{0}', space=vmem, size = 0x8000, scoped, tag = 'input window, operand 0, single buffered']
    #allocation4 [shape = 's32[1]{0}', space=sflag, size = 0x4, scoped, tag = 'scoped memory for tpu_custom_call.1']
    #allocation5 [shape = 's32[1]{0}', space=sflag, size = 0x4, scoped, tag = 'scoped memory for tpu_custom_call.1']
    #allocation6 [shape = 'u8[4096]{0}', space=vmem, size = 0x1000, scoped, tag = 'input window, operand 1, single buffered']
    #allocation7 [shape = 's32[1]{0}', space=sflag, size = 0x4, scoped, tag = 'scoped memory for tpu_custom_call.1']
    #allocation8 [shape = 'u8[8192]{0}', space=vmem, size = 0x2000, scoped, tag = 'input window, operand 2, single buffered']
    #allocation9 [shape = 'u8[8192]{0}', space=vmem, size = 0x2000, scoped, tag = 'input window, operand 3, single buffered']
    #allocation10 [shape = 's32[1]{0}', space=sflag, size = 0x4, scoped, tag = 'scoped memory for tpu_custom_call.1']
    #allocation11 [shape = 'u8[4096]{0}', space=vmem, size = 0x1000, scoped, tag = 'output window, operand 0, single buffered']
    #allocation12 [shape = 'u8[4096]{0}', space=vmem, size = 0x1000, scoped, tag = 'output window, operand 1, single buffered']
    #allocation13 [shape = 's32[1]{0}', space=sflag, size = 0x4, scoped, tag = 'scoped memory for tpu_custom_call.1']
    %15 = vsyncpa [#allocation4], 0
    %16 = vsyncpa [#allocation7], 0
    %17 = vsyncpa [#allocation10], 0
    %18 = vsyncpa [#allocation5], 0
    %19 = vsyncpa [#allocation13], 0
    // Predicated region
    $region2: #{tpu_custom_call.1} parent=1 // pred_check
      _
    $region3: #{tpu_custom_call.1} parent=1 // pred_check_branch
      %21 = sbr.rel (0) target = $region5
    $region4: #{tpu_custom_call.1} parent=1 // pred_region
      %s23 = ssub.s32 1024, 1024
      %24 = vsyncadd [#allocation4], %s23
      %s25 = sshll.u32 [#allocation3], 4
      %s26 = int_to_ptr.vmem [resolvable:$true] %s25
      %31 = dma.hbm_to_vmem [thread:$0]  %s0, 1024, %s26, [#allocation4], 128, 128, 8
    $region5: #{tpu_custom_call.1} parent=1 // pred_fallthru
      _
    // Predicated region
    $region6: #{tpu_custom_call.1} parent=1 // pred_check
      _
    $region7: #{tpu_custom_call.1} parent=1 // pred_check_branch
      %33 = sbr.rel (0) target = $region9
    $region8: #{tpu_custom_call.1} parent=1 // pred_region
      %s35 = ssub.s32 128, 128
      %36 = vsyncadd [#allocation7], %s35
      %s38 = sshll.u32 [#allocation6], 4
      %s39 = int_to_ptr.vmem [resolvable:$true] %s38
      %41 = dma.hbm_to_vmem [thread:$0]  %s1, 128, %s39, [#allocation7]
    $region9: #{tpu_custom_call.1} parent=1 // pred_fallthru
      _
    // Predicated region
    $region10: #{tpu_custom_call.1} parent=1 // pred_check
      _
    $region11: #{tpu_custom_call.1} parent=1 // pred_check_branch
      %43 = sbr.rel (0) target = $region13
    $region12: #{tpu_custom_call.1} parent=1 // pred_region
      %s45 = ssub.s32 256, 256
      %46 = vsyncadd [#allocation7], %s45
      %s47 = sshll.u32 [#allocation8], 4
      %s48 = int_to_ptr.vmem [resolvable:$true] %s47
      %53 = dma.hbm_to_vmem [thread:$0]  %s2, 256, %s48, [#allocation7], 128, 128, 8
    $region13: #{tpu_custom_call.1} parent=1 // pred_fallthru
      _
    // Predicated region
    $region14: #{tpu_custom_call.1} parent=1 // pred_check
      _
    $region15: #{tpu_custom_call.1} parent=1 // pred_check_branch
      %55 = sbr.rel (0) target = $region17
    $region16: #{tpu_custom_call.1} parent=1 // pred_region
      %s57 = ssub.s32 256, 256
      %58 = vsyncadd [#allocation10], %s57
      %s59 = sshll.u32 [#allocation9], 4
      %s60 = int_to_ptr.vmem [resolvable:$true] %s59
      %65 = dma.hbm_to_vmem [thread:$0]  %s3, 256, %s60, [#allocation10], 128, 128, 8
    $region17: #{tpu_custom_call.1} parent=1 // pred_fallthru
      _
    // Predicated region
    $region18: #{tpu_custom_call.1} parent=1 // pred_check
      _
    $region19: #{tpu_custom_call.1} parent=1 // pred_check_branch
      %67 = sbr.rel (0) target = $region21
    $region20: #{tpu_custom_call.1} parent=1 // pred_region
      _
    $region21: #{tpu_custom_call.1} parent=1 // pred_fallthru
      _
    // Predicated region
    $region22: #{tpu_custom_call.1} parent=1 // pred_check
      _
    $region23: #{tpu_custom_call.1} parent=1 // pred_check_branch
      %69 = sbr.rel (0) target = $region25
    $region24: #{tpu_custom_call.1} parent=1 // pred_region
      _
    $region25: #{tpu_custom_call.1} parent=1 // pred_fallthru
      _
    // Predicated region
    $region26: #{tpu_custom_call.1} parent=1 // pred_check
      _
    $region27: #{tpu_custom_call.1} parent=1 // pred_check_branch
      %71 = sbr.rel (0) target = $region29
    $region28: #{tpu_custom_call.1} parent=1 // pred_region
      _
    $region29: #{tpu_custom_call.1} parent=1 // pred_fallthru
      _
    // Predicated region
    $region30: #{tpu_custom_call.1} parent=1 // pred_check
      _
    $region31: #{tpu_custom_call.1} parent=1 // pred_check_branch
      %73 = sbr.rel (0) target = $region33
    $region32: #{tpu_custom_call.1} parent=1 // pred_region
      %74 = dma.done [#allocation4], 1024
    $region33: #{tpu_custom_call.1} parent=1 // pred_fallthru
      _
    // Predicated region
    $region34: #{tpu_custom_call.1} parent=1 // pred_check
      _
    $region35: #{tpu_custom_call.1} parent=1 // pred_check_branch
      %76 = sbr.rel (0) target = $region37
    $region36: #{tpu_custom_call.1} parent=1 // pred_region
      %77 = dma.done [#allocation7], 128
    $region37: #{tpu_custom_call.1} parent=1 // pred_fallthru
      _
    // Predicated region
    $region38: #{tpu_custom_call.1} parent=1 // pred_check
      _
    $region39: #{tpu_custom_call.1} parent=1 // pred_check_branch
      %79 = sbr.rel (0) target = $region41
    $region40: #{tpu_custom_call.1} parent=1 // pred_region
      %80 = dma.done [#allocation7], 256
    $region41: #{tpu_custom_call.1} parent=1 // pred_fallthru
      _
    // Predicated region
    $region42: #{tpu_custom_call.1} parent=1 // pred_check
      _
    $region43: #{tpu_custom_call.1} parent=1 // pred_check_branch
      %82 = sbr.rel (0) target = $region45
    $region44: #{tpu_custom_call.1} parent=1 // pred_region
      %83 = dma.done [#allocation10], 256
    $region45: #{tpu_custom_call.1} parent=1 // pred_fallthru
      _
    %v84 = vld [vmem:[#allocation3] sm:$0xff]
    %v85 = vld [vmem:[#allocation3 + $0x8] sm:$0xff]
    %v86 = vld [vmem:[#allocation3 + $0x10] sm:$0xff]
    %v87 = vld [vmem:[#allocation3 + $0x18] sm:$0xff]
    %v88 = vld [vmem:[#allocation3 + $0x20] sm:$0xff]
    %v89 = vld [vmem:[#allocation3 + $0x28] sm:$0xff]
    %v90 = vld [vmem:[#allocation3 + $0x30] sm:$0xff]
    %v91 = vld [vmem:[#allocation3 + $0x38] sm:$0xff]
    %v92 = vld [vmem:[#allocation6] sm:$0xff]
    %v93 = vld [vmem:[#allocation8] sm:$0xff]
    %v94 = vld [vmem:[#allocation8 + $0x8] sm:$0xff]
    %v95 = vld [vmem:[%s4] sm:$0x1]
    %v97 = vlaneseq
    %v98 = vshrl.u32 %v97, 7
    %v99 = vsub.s32 0, %v98
    %v100 = vrot.slane %v95, %v99
    %vm102 = vcmask 130048
    %v104 = vsel %vm102, %v92, 0
    %106 = vmatprep.subr.mxu0 0.0
    %107 = vmatpush1.msra.mxu0 0.0
    %108 = vmatprep.subr.mxu0 0.0
    %109 = vmatpush1.msra.mxu0 0.0
    %110 = vmatprep.subr.mxu0 0.0
    %111 = vmatpush1.msra.mxu0 0.0
    %112 = vmatprep.subr.mxu0 0.0
    %113 = vmatpush1.msra.mxu0 0.0
    %114 = vmatprep.subr.mxu0 0.0
    %115 = vmatpush1.msra.mxu0 0.0
    %116 = vmatprep.subr.mxu0 0.0
    %117 = vmatpush1.msra.mxu0 0.0
    %118 = vmatprep.subr.mxu0 0.0
    %119 = vmatpush1.msra.mxu0 0.0
    %120 = vmatprep.subr.mxu0 0.0
    %121 = vmatpush1.msra.mxu0 0.0
    %122 = vmatprep.subr.mxu0 0.0
    %123 = vmatpush1.msra.mxu0 0.0
    %124 = vmatprep.subr.mxu0 0.0
    %125 = vmatpush1.msra.mxu0 0.0
    %126 = vmatprep.subr.mxu0 0.0
    %127 = vmatpush1.msra.mxu0 0.0
    %128 = vmatprep.subr.mxu0 0.0
    %129 = vmatpush1.msra.mxu0 0.0
    %130 = vmatprep.subr.mxu0 0.0
    %131 = vmatpush1.msra.mxu0 0.0
    %132 = vmatprep.subr.mxu0 0.0
    %133 = vmatpush1.msra.mxu0 0.0
    %134 = vmatprep.subr.mxu0 0.0
    %135 = vmatpush1.msra.mxu0 %v94
    %136 = vmatprep.subr.mxu0 0.0
    %137 = vmatpush1.msra.mxu0 %v93
    %138 = vmatprep.subr.mxu0 0.0
    %139 = vmatpush2.msra.mxu0 0.0
    %140 = vmatprep.subr.mxu0 0.0
    %141 = vmatpush2.msra.mxu0 0.0
    %142 = vmatprep.subr.mxu0 0.0
    %143 = vmatpush2.msra.mxu0 0.0
    %144 = vmatprep.subr.mxu0 0.0
    %145 = vmatpush2.msra.mxu0 0.0
    %146 = vmatprep.subr.mxu0 0.0
    %147 = vmatpush2.msra.mxu0 0.0
    %148 = vmatprep.subr.mxu0 0.0
    %149 = vmatpush2.msra.mxu0 0.0
    %150 = vmatprep.subr.mxu0 0.0
    %151 = vmatpush2.msra.mxu0 0.0
    %152 = vmatprep.subr.mxu0 0.0
    %153 = vmatpush2.msra.mxu0 0.0
    %154 = vmatprep.subr.mxu0 0.0
    %155 = vmatpush2.msra.mxu0 0.0
    %156 = vmatprep.subr.mxu0 0.0
    %157 = vmatpush2.msra.mxu0 0.0
    %158 = vmatprep.subr.mxu0 0.0
    %159 = vmatpush2.msra.mxu0 0.0
    %160 = vmatprep.subr.mxu0 0.0
    %161 = vmatpush2.msra.mxu0 0.0
    %162 = vmatprep.subr.mxu0 0.0
    %163 = vmatpush2.msra.mxu0 0.0
    %164 = vmatprep.subr.mxu0 0.0
    %165 = vmatpush2.msra.mxu0 0.0
    %166 = vmatprep.subr.mxu0 0.0
    %167 = vmatpush2.msra.mxu0 0.0
    %168 = vmatprep.subr.mxu0 0.0
    %169 = vmatpush2.msra.mxu0 0.0
    %170 = vmatprep.mubr.f32.mxu0 0.0
    %171 = vmatmul.mubr.f32.gmra.mxu0 %v104
    %v172 = vpop.f32.mrf.mxu0
    %v173 = vadd.f32 %v100, %v172
    %v174 = vpop.f32.mrf.mxu0
    %175 = vdwg.mxu0
    %v176 = vld [vmem:[#allocation9] sm:$0xff]
    %v177 = vld [vmem:[#allocation9 + $0x8] sm:$0xff]
    %v179 = vsel %vm102, %v84, 0
    %v182 = vsel %vm102, %v85, 0
    %v185 = vsel %vm102, %v86, 0
    %v188 = vsel %vm102, %v87, 0
    %v191 = vsel %vm102, %v88, 0
    %v194 = vsel %vm102, %v89, 0
    %v197 = vsel %vm102, %v90, 0
    %v200 = vsel %vm102, %v91, 0
    %202 = vmatprep.subr.mxu0 0.0
    %203 = vmatpush1.msra.mxu0 0.0
    %204 = vmatprep.subr.mxu0 0.0
    %205 = vmatpush1.msra.mxu0 0.0
    %206 = vmatprep.subr.mxu0 0.0
    %207 = vmatpush1.msra.mxu0 0.0
    %208 = vmatprep.subr.mxu0 0.0
    %209 = vmatpush1.msra.mxu0 0.0
    %210 = vmatprep.subr.mxu0 0.0
    %211 = vmatpush1.msra.mxu0 0.0
    %212 = vmatprep.subr.mxu0 0.0
    %213 = vmatpush1.msra.mxu0 0.0
    %214 = vmatprep.subr.mxu0 0.0
    %215 = vmatpush1.msra.mxu0 0.0
    %216 = vmatprep.subr.mxu0 0.0
    %217 = vmatpush1.msra.mxu0 0.0
    %218 = vmatprep.subr.mxu0 0.0
    %219 = vmatpush1.msra.mxu0 0.0
    %220 = vmatprep.subr.mxu0 0.0
    %221 = vmatpush1.msra.mxu0 0.0
    %222 = vmatprep.subr.mxu0 0.0
    %223 = vmatpush1.msra.mxu0 0.0
    %224 = vmatprep.subr.mxu0 0.0
    %225 = vmatpush1.msra.mxu0 0.0
    %226 = vmatprep.subr.mxu0 0.0
    %227 = vmatpush1.msra.mxu0 0.0
    %228 = vmatprep.subr.mxu0 0.0
    %229 = vmatpush1.msra.mxu0 0.0
    %230 = vmatprep.subr.mxu0 0.0
    %231 = vmatpush1.msra.mxu0 %v177
    %232 = vmatprep.subr.mxu0 0.0
    %233 = vmatpush1.msra.mxu0 %v176
    %234 = vmatprep.subr.mxu0 0.0
    %235 = vmatpush2.msra.mxu0 0.0
    %236 = vmatprep.subr.mxu0 0.0
    %237 = vmatpush2.msra.mxu0 0.0
    %238 = vmatprep.subr.mxu0 0.0
    %239 = vmatpush2.msra.mxu0 0.0
    %240 = vmatprep.subr.mxu0 0.0
    %241 = vmatpush2.msra.mxu0 0.0
    %242 = vmatprep.subr.mxu0 0.0
    %243 = vmatpush2.msra.mxu0 0.0
    %244 = vmatprep.subr.mxu0 0.0
    %245 = vmatpush2.msra.mxu0 0.0
    %246 = vmatprep.subr.mxu0 0.0
    %247 = vmatpush2.msra.mxu0 0.0
    %248 = vmatprep.subr.mxu0 0.0
    %249 = vmatpush2.msra.mxu0 0.0
    %250 = vmatprep.subr.mxu0 0.0
    %251 = vmatpush2.msra.mxu0 0.0
    %252 = vmatprep.subr.mxu0 0.0
    %253 = vmatpush2.msra.mxu0 0.0
    %254 = vmatprep.subr.mxu0 0.0
    %255 = vmatpush2.msra.mxu0 0.0
    %256 = vmatprep.subr.mxu0 0.0
    %257 = vmatpush2.msra.mxu0 0.0
    %258 = vmatprep.subr.mxu0 0.0
    %259 = vmatpush2.msra.mxu0 0.0
    %260 = vmatprep.subr.mxu0 0.0
    %261 = vmatpush2.msra.mxu0 0.0
    %262 = vmatprep.subr.mxu0 0.0
    %263 = vmatpush2.msra.mxu0 0.0
    %264 = vmatprep.subr.mxu0 0.0
    %265 = vmatpush2.msra.mxu0 0.0
    %266 = vmatprep.mubr.f32.mxu0 0.0
    %267 = vmatmul.mubr.f32.gmra.mxu0 %v179
    %v268 = vpop.f32.mrf.mxu0
    %v269 = vadd.f32 0.0, %v268
    %v270 = vpop.f32.mrf.mxu0
    %271 = vmatprep.mubr.f32.mxu0 0.0
    %272 = vmatmul.mubr.f32.gmra.mxu0 %v182
    %v273 = vpop.f32.mrf.mxu0
    %v274 = vadd.f32 0.0, %v273
    %v275 = vpop.f32.mrf.mxu0
    %276 = vmatprep.mubr.f32.mxu0 0.0
    %277 = vmatmul.mubr.f32.gmra.mxu0 %v185
    %v278 = vpop.f32.mrf.mxu0
    %v279 = vadd.f32 0.0, %v278
    %v280 = vpop.f32.mrf.mxu0
    %281 = vmatprep.mubr.f32.mxu0 0.0
    %282 = vmatmul.mubr.f32.gmra.mxu0 %v188
    %v283 = vpop.f32.mrf.mxu0
    %v284 = vadd.f32 0.0, %v283
    %v285 = vpop.f32.mrf.mxu0
    %286 = vmatprep.mubr.f32.mxu0 0.0
    %287 = vmatmul.mubr.f32.gmra.mxu0 %v191
    %v288 = vpop.f32.mrf.mxu0
    %v289 = vadd.f32 0.0, %v288
    %v290 = vpop.f32.mrf.mxu0
    %291 = vmatprep.mubr.f32.mxu0 0.0
    %292 = vmatmul.mubr.f32.gmra.mxu0 %v194
    %v293 = vpop.f32.mrf.mxu0
    %v294 = vadd.f32 0.0, %v293
    %v295 = vpop.f32.mrf.mxu0
    %296 = vmatprep.mubr.f32.mxu0 0.0
    %297 = vmatmul.mubr.f32.gmra.mxu0 %v197
    %v298 = vpop.f32.mrf.mxu0
    %v299 = vadd.f32 0.0, %v298
    %v300 = vpop.f32.mrf.mxu0
    %301 = vmatprep.mubr.f32.mxu0 0.0
    %302 = vmatmul.mubr.f32.gmra.mxu0 %v200
    %v303 = vpop.f32.mrf.mxu0
    %v304 = vadd.f32 0.0, %v303
    %v305 = vpop.f32.mrf.mxu0
    %306 = vdwg.mxu0
    %v308 = vcombine.high %v173, %v173
    %v310 = vunpack.c.l.s4 1966171168
    %v311 = vunpack.c.0.s8 %v310
    %v312 = vlaneseq
    %v313 = vshrl.u32 %v312, 7
    %v314 = vsub.s32 %v311, %v313
    %v315 = vrot.slane %v173, %v314
    %v317 = vunpack.c.l.s4 1966171168
    %v318 = vunpack.c.0.s8 %v317
    %v319 = vlaneseq
    %v320 = vshrl.u32 %v319, 7
    %v321 = vsub.s32 %v318, %v320
    %v322 = vrot.slane %v308, %v321
    %v323 = vcombine.high %v315, %v315
    %v324 = vcombine.high %v322, %v322
    %v326 = vunpack.c.l.s4 1966171168
    %v327 = vunpack.c.0.s8 %v326
    %v328 = vlaneseq
    %v329 = vshrl.u32 %v328, 7
    %v330 = vsub.s32 %v327, %v329
    %v331 = vrot.slane %v315, %v330
    %v333 = vunpack.c.l.s4 1966171168
    %v334 = vunpack.c.0.s8 %v333
    %v335 = vlaneseq
    %v336 = vshrl.u32 %v335, 7
    %v337 = vsub.s32 %v334, %v336
    %v338 = vrot.slane %v322, %v337
    %v340 = vunpack.c.l.s4 1966171168
    %v341 = vunpack.c.0.s8 %v340
    %v342 = vlaneseq
    %v343 = vshrl.u32 %v342, 7
    %v344 = vsub.s32 %v341, %v343
    %v345 = vrot.slane %v323, %v344
    %v347 = vunpack.c.l.s4 1966171168
    %v348 = vunpack.c.0.s8 %v347
    %v349 = vlaneseq
    %v350 = vshrl.u32 %v349, 7
    %v351 = vsub.s32 %v348, %v350
    %v352 = vrot.slane %v324, %v351
    %v353 = vcombine.high %v331, %v331
    %v354 = vcombine.high %v338, %v338
    %v355 = vcombine.high %v345, %v345
    %v356 = vcombine.high %v352, %v352
    %v357 = vlaneseq
    %v358 = vshrl.u32 %v357, 7
    %v359 = vsub.s32 0, %v358
    %v360 = vrot.slane %v331, %v359
    %v361 = vlaneseq
    %v362 = vshrl.u32 %v361, 7
    %v363 = vsub.s32 0, %v362
    %v364 = vrot.slane %v345, %v363
    %v365 = vlaneseq
    %v366 = vshrl.u32 %v365, 7
    %v367 = vsub.s32 0, %v366
    %v368 = vrot.slane %v353, %v367
    %v369 = vlaneseq
    %v370 = vshrl.u32 %v369, 7
    %v371 = vsub.s32 0, %v370
    %v372 = vrot.slane %v355, %v371
    %v373 = vlaneseq
    %v374 = vshrl.u32 %v373, 7
    %v375 = vsub.s32 0, %v374
    %v376 = vrot.slane %v338, %v375
    %v377 = vlaneseq
    %v378 = vshrl.u32 %v377, 7
    %v379 = vsub.s32 0, %v378
    %v380 = vrot.slane %v352, %v379
    %v381 = vlaneseq
    %v382 = vshrl.u32 %v381, 7
    %v383 = vsub.s32 0, %v382
    %v384 = vrot.slane %v354, %v383
    %v385 = vlaneseq
    %v386 = vshrl.u32 %v385, 7
    %v387 = vsub.s32 0, %v386
    %v388 = vrot.slane %v356, %v387
    %v397 = vadd.f32 %v360, %v269
    %v398 = vadd.f32 %v364, %v274
    %v399 = vadd.f32 %v368, %v279
    %v400 = vadd.f32 %v372, %v284
    %v401 = vadd.f32 %v376, %v289
    %v402 = vadd.f32 %v380, %v294
    %v403 = vadd.f32 %v384, %v299
    %v404 = vadd.f32 %v388, %v304
    %v405 = vtanh.pop %v397
    %v406 = vtanh.pop %v398
    %v407 = vtanh.pop %v399
    %v408 = vtanh.pop %v400
    %v409 = vtanh.pop %v401
    %v410 = vtanh.pop %v402
    %v411 = vtanh.pop %v403
    %v412 = vtanh.pop %v404
    %v413 = vld [vmem:[%s5] sm:$0x1]
    %v415 = vlaneseq
    %v416 = vshrl.u32 %v415, 7
    %v417 = vsub.s32 0, %v416
    %v418 = vrot.slane %v413, %v417
    %v420 = vmul.f32 %v405, %v418
    %v421 = vmul.f32 %v406, %v418
    %v422 = vmul.f32 %v407, %v418
    %v423 = vmul.f32 %v408, %v418
    %v424 = vmul.f32 %v409, %v418
    %v425 = vmul.f32 %v410, %v418
    %v426 = vmul.f32 %v411, %v418
    %v427 = vmul.f32 %v412, %v418
    %vm428 = vcmask 261120
    %v429 = vsel %vm428, %v420, 0.0
    %430 = vadd.xlane.f32.xlu0 %v429
    %v431 = vpop.xlane.xlu0 %430
    %v432 = vsel %vm428, %v421, 0.0
    %433 = vadd.xlane.f32.xlu0 %v432
    %v434 = vpop.xlane.xlu0 %433
    %v435 = vsel %vm428, %v422, 0.0
    %436 = vadd.xlane.f32.xlu0 %v435
    %v437 = vpop.xlane.xlu0 %436
    %v438 = vsel %vm428, %v423, 0.0
    %439 = vadd.xlane.f32.xlu0 %v438
    %v440 = vpop.xlane.xlu0 %439
    %v441 = vsel %vm428, %v424, 0.0
    %442 = vadd.xlane.f32.xlu0 %v441
    %v443 = vpop.xlane.xlu0 %442
    %v444 = vsel %vm428, %v425, 0.0
    %445 = vadd.xlane.f32.xlu0 %v444
    %v446 = vpop.xlane.xlu0 %445
    %v447 = vsel %vm428, %v426, 0.0
    %448 = vadd.xlane.f32.xlu0 %v447
    %v449 = vpop.xlane.xlu0 %448
    %v450 = vsel %vm428, %v427, 0.0
    %451 = vadd.xlane.f32.xlu0 %v450
    %v452 = vpop.xlane.xlu0 %451
    %s453 = sld [smem:[#allocation2]]
    %v454 = vstv %s453
    %v455 = vadd.f32 %v431, %v454
    %v456 = vadd.f32 %v434, %v454
    %v457 = vadd.f32 %v437, %v454
    %v458 = vadd.f32 %v440, %v454
    %v459 = vadd.f32 %v443, %v454
    %v460 = vadd.f32 %v446, %v454
    %v461 = vadd.f32 %v449, %v454
    %v462 = vadd.f32 %v452, %v454
    %v471 = vlaneseq
    %v472 = vand.u32 %v471, 127
    %v473 = vlaneseq
    %v474 = vshrl.u32 %v473, 7
    %v475 = vsub.s32 %v472, %v474
    %v476 = vrot.slane %v455, %v475
    %v477 = vlaneseq
    %v478 = vshrl.u32 %v477, 7
    %v479 = vsub.s32 %v472, %v478
    %v480 = vrot.slane %v456, %v479
    %v481 = vlaneseq
    %v482 = vshrl.u32 %v481, 7
    %v483 = vsub.s32 %v472, %v482
    %v484 = vrot.slane %v457, %v483
    %v485 = vlaneseq
    %v486 = vshrl.u32 %v485, 7
    %v487 = vsub.s32 %v472, %v486
    %v488 = vrot.slane %v458, %v487
    %v489 = vlaneseq
    %v490 = vshrl.u32 %v489, 7
    %v491 = vsub.s32 %v472, %v490
    %v492 = vrot.slane %v459, %v491
    %v493 = vlaneseq
    %v494 = vshrl.u32 %v493, 7
    %v495 = vsub.s32 %v472, %v494
    %v496 = vrot.slane %v460, %v495
    %v497 = vlaneseq
    %v498 = vshrl.u32 %v497, 7
    %v499 = vsub.s32 %v472, %v498
    %v500 = vrot.slane %v461, %v499
    %v501 = vlaneseq
    %v502 = vshrl.u32 %v501, 7
    %v503 = vsub.s32 %v472, %v502
    %v504 = vrot.slane %v462, %v503
    %vm505 = vcmask 1041409
    %v506 = vsel %vm505, %v480, %v476
    %vm507 = vcmask 1042434
    %v508 = vsel %vm507, %v484, %v506
    %vm509 = vcmask 1043459
    %v510 = vsel %vm509, %v488, %v508
    %vm511 = vcmask 1044484
    %v512 = vsel %vm511, %v492, %v510
    %vm513 = vcmask 1045509
    %v514 = vsel %vm513, %v496, %v512
    %vm515 = vcmask 1046534
    %v516 = vsel %vm515, %v500, %v514
    %vm517 = vcmask 1047559
    %v518 = vsel %vm517, %v504, %v516
    %vm520 = vcmask 64512
    %v521 = vsel %vm520, %v518, -inf
    %522 = vmax.xlane.f32.xlu0 %v521
    %v523 = vpop.xlane.xlu0 %522
    %v525 = vlaneseq
    %v526 = vshrl.u32 %v525, 7
    %v527 = vsub.s32 0, %v526
    %v528 = vrot.slane %v523, %v527
    %v529 = vlaneseq
    %v530 = vshrl.u32 %v529, 7
    %v531 = vsub.s32 1, %v530
    %v532 = vrot.slane %v523, %v531
    %v533 = vlaneseq
    %v534 = vshrl.u32 %v533, 7
    %v535 = vsub.s32 2, %v534
    %v536 = vrot.slane %v523, %v535
    %v537 = vlaneseq
    %v538 = vshrl.u32 %v537, 7
    %v539 = vsub.s32 3, %v538
    %v540 = vrot.slane %v523, %v539
    %v541 = vlaneseq
    %v542 = vshrl.u32 %v541, 7
    %v543 = vsub.s32 4, %v542
    %v544 = vrot.slane %v523, %v543
    %v545 = vlaneseq
    %v546 = vshrl.u32 %v545, 7
    %v547 = vsub.s32 5, %v546
    %v548 = vrot.slane %v523, %v547
    %v549 = vlaneseq
    %v550 = vshrl.u32 %v549, 7
    %v551 = vsub.s32 6, %v550
    %v552 = vrot.slane %v523, %v551
    %v553 = vlaneseq
    %v554 = vshrl.u32 %v553, 7
    %v555 = vsub.s32 7, %v554
    %v556 = vrot.slane %v523, %v555
    %v565 = vsub.f32 %v455, %v528
    %v566 = vsub.f32 %v456, %v532
    %v567 = vsub.f32 %v457, %v536
    %v568 = vsub.f32 %v458, %v540
    %v569 = vsub.f32 %v459, %v544
    %v570 = vsub.f32 %v460, %v548
    %v571 = vsub.f32 %v461, %v552
    %v572 = vsub.f32 %v462, %v556
    %v573 = vmul.f32 %v565, 1.442695
    %v574 = vpow.pop %v573
    %v575 = vmul.f32 %v566, 1.442695
    %v576 = vpow.pop %v575
    %v577 = vmul.f32 %v567, 1.442695
    %v578 = vpow.pop %v577
    %v579 = vmul.f32 %v568, 1.442695
    %v580 = vpow.pop %v579
    %v581 = vmul.f32 %v569, 1.442695
    %v582 = vpow.pop %v581
    %v583 = vmul.f32 %v570, 1.442695
    %v584 = vpow.pop %v583
    %v585 = vmul.f32 %v571, 1.442695
    %v586 = vpow.pop %v585
    %v587 = vmul.f32 %v572, 1.442695
    %v588 = vpow.pop %v587
    %597 = vset.pattern.permute.xlu0 0
    %598 = vperm.xlu0 %597, %v574
    %v599 = vpop.permute.xlu0 %598
    %600 = vset.pattern.permute.xlu0 0
    %601 = vperm.xlu0 %600, %v576
    %v602 = vpop.permute.xlu0 %601
    %603 = vset.pattern.permute.xlu0 0
    %604 = vperm.xlu0 %603, %v578
    %v605 = vpop.permute.xlu0 %604
    %606 = vset.pattern.permute.xlu0 0
    %607 = vperm.xlu0 %606, %v580
    %v608 = vpop.permute.xlu0 %607
    %609 = vset.pattern.permute.xlu0 0
    %610 = vperm.xlu0 %609, %v582
    %v611 = vpop.permute.xlu0 %610
    %612 = vset.pattern.permute.xlu0 0
    %613 = vperm.xlu0 %612, %v584
    %v614 = vpop.permute.xlu0 %613
    %615 = vset.pattern.permute.xlu0 0
    %616 = vperm.xlu0 %615, %v586
    %v617 = vpop.permute.xlu0 %616
    %618 = vset.pattern.permute.xlu0 0
    %619 = vperm.xlu0 %618, %v588
    %v620 = vpop.permute.xlu0 %619
    %v621 = vlaneseq
    %v622 = vshrl.u32 %v621, 7
    %v623 = vsub.s32 %v472, %v622
    %v624 = vrot.slane %v599, %v623
    %v625 = vlaneseq
    %v626 = vshrl.u32 %v625, 7
    %v627 = vsub.s32 %v472, %v626
    %v628 = vrot.slane %v602, %v627
    %v629 = vlaneseq
    %v630 = vshrl.u32 %v629, 7
    %v631 = vsub.s32 %v472, %v630
    %v632 = vrot.slane %v605, %v631
    %v633 = vlaneseq
    %v634 = vshrl.u32 %v633, 7
    %v635 = vsub.s32 %v472, %v634
    %v636 = vrot.slane %v608, %v635
    %v637 = vlaneseq
    %v638 = vshrl.u32 %v637, 7
    %v639 = vsub.s32 %v472, %v638
    %v640 = vrot.slane %v611, %v639
    %v641 = vlaneseq
    %v642 = vshrl.u32 %v641, 7
    %v643 = vsub.s32 %v472, %v642
    %v644 = vrot.slane %v614, %v643
    %v645 = vlaneseq
    %v646 = vshrl.u32 %v645, 7
    %v647 = vsub.s32 %v472, %v646
    %v648 = vrot.slane %v617, %v647
    %v649 = vlaneseq
    %v650 = vshrl.u32 %v649, 7
    %v651 = vsub.s32 %v472, %v650
    %v652 = vrot.slane %v620, %v651
    %v653 = vsel %vm505, %v628, %v624
    %v654 = vsel %vm507, %v632, %v653
    %v655 = vsel %vm509, %v636, %v654
    %v656 = vsel %vm511, %v640, %v655
    %v657 = vsel %vm513, %v644, %v656
    %v658 = vsel %vm515, %v648, %v657
    %v659 = vsel %vm517, %v652, %v658
    %v661 = vsel %vm520, %v659, 0.0
    %662 = vadd.xlane.f32.xlu0 %v661
    %v663 = vpop.xlane.xlu0 %662
    %v665 = vlaneseq
    %v666 = vshrl.u32 %v665, 7
    %v667 = vsub.s32 0, %v666
    %v668 = vrot.slane %v663, %v667
    %v669 = vlaneseq
    %v670 = vshrl.u32 %v669, 7
    %v671 = vsub.s32 1, %v670
    %v672 = vrot.slane %v663, %v671
    %v673 = vlaneseq
    %v674 = vshrl.u32 %v673, 7
    %v675 = vsub.s32 2, %v674
    %v676 = vrot.slane %v663, %v675
    %v677 = vlaneseq
    %v678 = vshrl.u32 %v677, 7
    %v679 = vsub.s32 3, %v678
    %v680 = vrot.slane %v663, %v679
    %v681 = vlaneseq
    %v682 = vshrl.u32 %v681, 7
    %v683 = vsub.s32 4, %v682
    %v684 = vrot.slane %v663, %v683
    %v685 = vlaneseq
    %v686 = vshrl.u32 %v685, 7
    %v687 = vsub.s32 5, %v686
    %v688 = vrot.slane %v663, %v687
    %v689 = vlaneseq
    %v690 = vshrl.u32 %v689, 7
    %v691 = vsub.s32 6, %v690
    %v692 = vrot.slane %v663, %v691
    %v693 = vlaneseq
    %v694 = vshrl.u32 %v693, 7
    %v695 = vsub.s32 7, %v694
    %v696 = vrot.slane %v663, %v695
    %v705 = vrcp.pop %v668
    %v706 = vmul.f32 %v574, %v705
    %v707 = vrcp.pop %v672
    %v708 = vmul.f32 %v576, %v707
    %v709 = vrcp.pop %v676
    %v710 = vmul.f32 %v578, %v709
    %v711 = vrcp.pop %v680
    %v712 = vmul.f32 %v580, %v711
    %v713 = vrcp.pop %v684
    %v714 = vmul.f32 %v582, %v713
    %v715 = vrcp.pop %v688
    %v716 = vmul.f32 %v584, %v715
    %v717 = vrcp.pop %v692
    %v718 = vmul.f32 %v586, %v717
    %v719 = vrcp.pop %v696
    %v720 = vmul.f32 %v588, %v719
    %722 = vset.pattern.permute.xlu0 0
    %723 = vperm.xlu0 %722, %v706
    %v724 = vpop.permute.xlu0 %723
    %727 = vset.pattern.permute.xlu0 0
    %728 = vperm.xlu0 %727, %v708
    %v729 = vpop.permute.xlu0 %728
    %732 = vset.pattern.permute.xlu0 0
    %733 = vperm.xlu0 %732, %v710
    %v734 = vpop.permute.xlu0 %733
    %737 = vset.pattern.permute.xlu0 0
    %738 = vperm.xlu0 %737, %v712
    %v739 = vpop.permute.xlu0 %738
    %742 = vset.pattern.permute.xlu0 0
    %743 = vperm.xlu0 %742, %v714
    %v744 = vpop.permute.xlu0 %743
    %747 = vset.pattern.permute.xlu0 0
    %748 = vperm.xlu0 %747, %v716
    %v749 = vpop.permute.xlu0 %748
    %752 = vset.pattern.permute.xlu0 0
    %753 = vperm.xlu0 %752, %v718
    %v754 = vpop.permute.xlu0 %753
    %757 = vset.pattern.permute.xlu0 0
    %758 = vperm.xlu0 %757, %v720
    %v759 = vpop.permute.xlu0 %758
    %v761 = vmul.f32 %v724, %v84
    %v762 = vmul.f32 %v729, %v85
    %v763 = vmul.f32 %v734, %v86
    %v764 = vmul.f32 %v739, %v87
    %v765 = vmul.f32 %v744, %v88
    %v766 = vmul.f32 %v749, %v89
    %v767 = vmul.f32 %v754, %v90
    %v768 = vmul.f32 %v759, %v91
    %v769 = vsel %vm102, %v761, 0.0
    %v770 = vrot.slane %v769, 4
    %v771 = vadd.f32 %v769, %v770
    %v772 = vrot.slane %v771, 2
    %v773 = vadd.f32 %v771, %v772
    %v774 = vrot.slane %v773, 1
    %v775 = vadd.f32 %v773, %v774
    %v776 = vsel %vm102, %v762, 0.0
    %v777 = vrot.slane %v776, 4
    %v778 = vadd.f32 %v776, %v777
    %v779 = vrot.slane %v778, 2
    %v780 = vadd.f32 %v778, %v779
    %v781 = vrot.slane %v780, 1
    %v782 = vadd.f32 %v780, %v781
    %v783 = vsel %vm102, %v763, 0.0
    %v784 = vrot.slane %v783, 4
    %v785 = vadd.f32 %v783, %v784
    %v786 = vrot.slane %v785, 2
    %v787 = vadd.f32 %v785, %v786
    %v788 = vrot.slane %v787, 1
    %v789 = vadd.f32 %v787, %v788
    %v790 = vsel %vm102, %v764, 0.0
    %v791 = vrot.slane %v790, 4
    %v792 = vadd.f32 %v790, %v791
    %v793 = vrot.slane %v792, 2
    %v794 = vadd.f32 %v792, %v793
    %v795 = vrot.slane %v794, 1
    %v796 = vadd.f32 %v794, %v795
    %v797 = vsel %vm102, %v765, 0.0
    %v798 = vrot.slane %v797, 4
    %v799 = vadd.f32 %v797, %v798
    %v800 = vrot.slane %v799, 2
    %v801 = vadd.f32 %v799, %v800
    %v802 = vrot.slane %v801, 1
    %v803 = vadd.f32 %v801, %v802
    %v804 = vsel %vm102, %v766, 0.0
    %v805 = vrot.slane %v804, 4
    %v806 = vadd.f32 %v804, %v805
    %v807 = vrot.slane %v806, 2
    %v808 = vadd.f32 %v806, %v807
    %v809 = vrot.slane %v808, 1
    %v810 = vadd.f32 %v808, %v809
    %v811 = vsel %vm102, %v767, 0.0
    %v812 = vrot.slane %v811, 4
    %v813 = vadd.f32 %v811, %v812
    %v814 = vrot.slane %v813, 2
    %v815 = vadd.f32 %v813, %v814
    %v816 = vrot.slane %v815, 1
    %v817 = vadd.f32 %v815, %v816
    %v818 = vsel %vm102, %v768, 0.0
    %v819 = vrot.slane %v818, 4
    %v820 = vadd.f32 %v818, %v819
    %v821 = vrot.slane %v820, 2
    %v822 = vadd.f32 %v820, %v821
    %v823 = vrot.slane %v822, 1
    %v824 = vadd.f32 %v822, %v823
    %v833 = vsel %vm505, %v782, %v775
    %v834 = vsel %vm507, %v789, %v833
    %v835 = vsel %vm509, %v796, %v834
    %v836 = vsel %vm511, %v803, %v835
    %v837 = vsel %vm513, %v810, %v836
    %v838 = vsel %vm515, %v817, %v837
    %v839 = vsel %vm517, %v824, %v838
    %841 = vst.msk [vmem:[#allocation11] sm:$0xff] %vm102, %v839
    %v842 = vlaneseq
    %v843 = vshrl.u32 %v842, 7
    %v844 = vsub.s32 %v472, %v843
    %v845 = vrot.slane %v724, %v844
    %v846 = vlaneseq
    %v847 = vshrl.u32 %v846, 7
    %v848 = vsub.s32 %v472, %v847
    %v849 = vrot.slane %v729, %v848
    %v850 = vlaneseq
    %v851 = vshrl.u32 %v850, 7
    %v852 = vsub.s32 %v472, %v851
    %v853 = vrot.slane %v734, %v852
    %v854 = vlaneseq
    %v855 = vshrl.u32 %v854, 7
    %v856 = vsub.s32 %v472, %v855
    %v857 = vrot.slane %v739, %v856
    %v858 = vlaneseq
    %v859 = vshrl.u32 %v858, 7
    %v860 = vsub.s32 %v472, %v859
    %v861 = vrot.slane %v744, %v860
    %v862 = vlaneseq
    %v863 = vshrl.u32 %v862, 7
    %v864 = vsub.s32 %v472, %v863
    %v865 = vrot.slane %v749, %v864
    %v866 = vlaneseq
    %v867 = vshrl.u32 %v866, 7
    %v868 = vsub.s32 %v472, %v867
    %v869 = vrot.slane %v754, %v868
    %v870 = vlaneseq
    %v871 = vshrl.u32 %v870, 7
    %v872 = vsub.s32 %v472, %v871
    %v873 = vrot.slane %v759, %v872
    %v874 = vsel %vm505, %v849, %v845
    %v875 = vsel %vm507, %v853, %v874
    %v876 = vsel %vm509, %v857, %v875
    %v877 = vsel %vm511, %v861, %v876
    %v878 = vsel %vm513, %v865, %v877
    %v879 = vsel %vm515, %v869, %v878
    %v880 = vsel %vm517, %v873, %v879
    %882 = vst.msk [vmem:[#allocation12] sm:$0xff] %vm520, %v880
    // Predicated region
    $region46: #{tpu_custom_call.1} parent=1 // pred_check
      _
    $region47: #{tpu_custom_call.1} parent=1 // pred_check_branch
      %884 = sbr.rel (0) target = $region49
    $region48: #{tpu_custom_call.1} parent=1 // pred_region
      %s886 = ssub.s32 128, 128
      %887 = vsyncadd [#allocation5], %s886
      %s889 = sshll.u32 [#allocation11], 4
      %s890 = int_to_ptr.vmem [resolvable:$true] %s889
      %892 = dma.vmem_to_hbm [thread:$0]  %s890, 128, %s7, [#allocation5]
    $region49: #{tpu_custom_call.1} parent=1 // pred_fallthru
      _
    // Predicated region
    $region50: #{tpu_custom_call.1} parent=1 // pred_check
      _
    $region51: #{tpu_custom_call.1} parent=1 // pred_check_branch
      %894 = sbr.rel (0) target = $region53
    $region52: #{tpu_custom_call.1} parent=1 // pred_region
      %s896 = ssub.s32 128, 128
      %897 = vsyncadd [#allocation13], %s896
      %s899 = sshll.u32 [#allocation12], 4
      %s900 = int_to_ptr.vmem [resolvable:$true] %s899
      %902 = dma.vmem_to_hbm [thread:$0]  %s900, 128, %s8, [#allocation13]
    $region53: #{tpu_custom_call.1} parent=1 // pred_fallthru
      _
    // Predicated region
    $region54: #{tpu_custom_call.1} parent=1 // pred_check
      _
    $region55: #{tpu_custom_call.1} parent=1 // pred_check_branch
      %904 = sbr.rel (0) target = $region57
    $region56: #{tpu_custom_call.1} parent=1 // pred_region
      %905 = dma.done [#allocation5], 128
    $region57: #{tpu_custom_call.1} parent=1 // pred_fallthru
      _
    // Predicated region
    $region58: #{tpu_custom_call.1} parent=1 // pred_check
      _
    $region59: #{tpu_custom_call.1} parent=1 // pred_check_branch
      %907 = sbr.rel (0) target = $region61
    $region60: #{tpu_custom_call.1} parent=1 // pred_region
      %908 = dma.done [#allocation13], 128
    $region61: #{tpu_custom_call.1} parent=1 // pred_fallthru
      _
    %909 = vsyncpa [#allocation4], 1
    %910 = vsyncpa [#allocation7], 1
    %911 = vsyncpa [#allocation10], 1
    %912 = vsyncpa [#allocation5], 1
    %913 = vsyncpa [#allocation13], 1

</llo_original>
